<compile_context>
chip_gen: v5e
topology: v5e:2x2
jax: 0.10.0
libtpu: 0.0.40
codegen_flags: <defaults>
</compile_context>

<pallas_src>
import functools

import jax
import jax.numpy as jnp
import numpy as np
from jax.experimental import pallas as pl
from jax.experimental.pallas import tpu as pltpu


def _round_up(x, m):
    return (x + m - 1) // m * m


def _cdiv(a, b):
    return -(-a // b)


def _choose_batch_tile(B, cap=1024):
    """Pick (tile_b, padded_B).

    - small B: a single tile (one grid step, minimal overhead)
    - mid B (>=512): exactly 2 steps so both v7x TensorCores get work
    - large B: steps of <=cap rows, grid length kept even for v7x megacore
    Padding waste stays small because the tile is derived from B itself.
    """
    b8 = _round_up(B, 8)
    if b8 <= cap:
        if b8 >= 512:
            tb = _round_up(_cdiv(b8, 2), 8)
        else:
            tb = b8
    else:
        n_steps = _cdiv(b8, cap)
        if n_steps % 2:
            n_steps += 1
        tb = _round_up(_cdiv(b8, n_steps), 8)
    b_pad = _round_up(B, tb)
    return tb, b_pad


def _decoder_kernel(h_ref, w1_ref, b1_ref, w2_ref, b2_ref, w3_ref, b3_ref, out_ref):
    f32 = jnp.float32
    cdt = w1_ref.dtype                       # MXU compute dtype (bf16)

    h = h_ref[...]                           # (TILE_B, kdim), already bf16

    a1 = jnp.dot(h, w1_ref[...], preferred_element_type=f32) + b1_ref[...]
    a1 = jnp.maximum(a1, 0.0)                # relu in f32 (VPU)

    a2 = jnp.dot(a1.astype(cdt), w2_ref[...], preferred_element_type=f32) + b2_ref[...]
    a2 = jnp.maximum(a2, 0.0)

    a3 = jnp.dot(a2.astype(cdt), w3_ref[...], preferred_element_type=f32) + b3_ref[...]

    # sigmoid on EUP; store bf16 -> halves writeback bytes / vst pressure.
    out_ref[...] = jax.nn.sigmoid(a3).astype(out_ref.dtype)


def make_params(key, latent_dim, n_classes, slen, hidden=128,
                compute_dtype=jnp.bfloat16):
    """PyTorch-style Linear init.  Weights stored in the MXU compute dtype,
    biases kept f32 (elementwise path).  fc3 columns are zero-padded to a
    multiple of 128 so the kernel's output tile is lane-dense."""
    n_pixels = slen * slen
    n_pix_pad = _round_up(n_pixels, 128)
    kdim = latent_dim + n_classes
    k = jax.random.split(key, 6)

    def u(kk, shape, fan_in):
        bound = 1.0 / np.sqrt(fan_in)
        return jax.random.uniform(kk, shape, jnp.float32, -bound, bound)

    w3 = u(k[4], (hidden, n_pixels), hidden)
    b3 = u(k[5], (1, n_pixels), hidden)
    if n_pix_pad != n_pixels:
        w3 = jnp.pad(w3, ((0, 0), (0, n_pix_pad - n_pixels)))
        b3 = jnp.pad(b3, ((0, 0), (0, n_pix_pad - n_pixels)))

    return dict(
        w1=u(k[0], (kdim, hidden), kdim).astype(compute_dtype),
        b1=u(k[1], (1, hidden), kdim),
        w2=u(k[2], (hidden, hidden), hidden).astype(compute_dtype),
        b2=u(k[3], (1, hidden), hidden),
        w3=w3.astype(compute_dtype),
        b3=b3,
    )


@functools.partial(jax.jit, static_argnames=("slen", "max_block_b", "out_dtype"))
def mlp_decoder_forward(latent_params, one_hot_label, params, slen,
                        max_block_b=1024, out_dtype=jnp.float32):
    """Pallas forward of MLPDecoder. Returns image_mean of shape (B, slen, slen)."""
    B, latent_dim = latent_params.shape
    assert one_hot_label.shape[0] == B
    n_classes = one_hot_label.shape[1]
    n_pixels = slen * slen
    kdim = latent_dim + n_classes
    hidden1 = params["w1"].shape[1]
    hidden2 = params["w2"].shape[1]
    n_pix_pad = params["w3"].shape[1]
    assert params["w1"].shape[0] == kdim
    assert n_pix_pad >= n_pixels

    cdt = params["w1"].dtype
    # Fused concat + cast: single lane-dense bf16 activation -> one K-dim
    # matmul in the kernel, half the activation DMA bytes of an f32 h.
    h = jnp.concatenate(
        [latent_params.astype(cdt), one_hot_label.astype(cdt)], axis=1)

    # Adaptive batch tiling (see _choose_batch_tile); weights stay
    # VMEM-resident across grid steps (index_map -> (0, 0)).
    tb, b_pad = _choose_batch_tile(B, max_block_b)
    if b_pad != B:
        h = jnp.pad(h, ((0, b_pad - B), (0, 0)))
    grid = (b_pad // tb,)

    flops = 2 * b_pad * (kdim * hidden1 + hidden1 * hidden2 + hidden2 * n_pix_pad)
    bytes_accessed = (
        b_pad * kdim * 2                                             # bf16 h in
        + sum(int(np.prod(params[name].shape)) * params[name].dtype.itemsize
              for name in params)                                    # weights/biases
        + b_pad * n_pix_pad * 2)                                     # bf16 out
    cost = pl.CostEstimate(flops=flops,
                           transcendentals=b_pad * n_pix_pad,
                           bytes_accessed=bytes_accessed)

    out_flat = pl.pallas_call(
        _decoder_kernel,
        out_shape=jax.ShapeDtypeStruct((b_pad, n_pix_pad), jnp.bfloat16),
        grid=grid,
        in_specs=[
            pl.BlockSpec((tb, kdim), lambda i: (i, 0)),          # activations: tiled
            pl.BlockSpec((kdim, hidden1), lambda i: (0, 0)),     # weights: resident
            pl.BlockSpec((1, hidden1), lambda i: (0, 0)),
            pl.BlockSpec((hidden1, hidden2), lambda i: (0, 0)),
            pl.BlockSpec((1, hidden2), lambda i: (0, 0)),
            pl.BlockSpec((hidden2, n_pix_pad), lambda i: (0, 0)),
            pl.BlockSpec((1, n_pix_pad), lambda i: (0, 0)),
        ],
        out_specs=pl.BlockSpec((tb, n_pix_pad), lambda i: (i, 0)),
        compiler_params=pltpu.CompilerParams(
            dimension_semantics=("parallel",)),                   # megacore / v7x 2-TC
        cost_estimate=cost,
    )(h, params["w1"], params["b1"], params["w2"], params["b2"],
      params["w3"], params["b3"])

    # Slice off batch padding and lane padding; cast (fused with the reshape)
    # to the requested output dtype (f32 default for PyTorch parity; pass
    # out_dtype=jnp.bfloat16 if the downstream loss can consume bf16 directly).
    img = out_flat[:B, :n_pixels].astype(out_dtype)
    return img.reshape(B, slen, slen)


def mlp_decoder_reference(latent_params, one_hot_label, params, slen):
    """Pure-JAX reference (f32 math) matching the PyTorch forward."""
    n_pixels = slen * slen
    h = jnp.concatenate(
        [latent_params.astype(jnp.float32), one_hot_label.astype(jnp.float32)],
        axis=1)
    a1 = jax.nn.relu(h @ params["w1"].astype(jnp.float32) + params["b1"])
    a2 = jax.nn.relu(a1 @ params["w2"].astype(jnp.float32) + params["b2"])
    a3 = a2 @ params["w3"].astype(jnp.float32) + params["b3"]
    return jax.nn.sigmoid(a3)[:, :n_pixels].reshape(-1, slen, slen)


if __name__ == "__main__":
    key = jax.random.PRNGKey(0)
    k_par, k_lat, k_lab = jax.random.split(key, 3)

    # Case 1: MNIST-shaped decoder (slen=28 -> n_pixels=784 padded to 896),
    # small odd batch (exercises batch round-up and output lane-pad slicing).
    LATENT_DIM, N_CLASSES, SLEN = 8, 10, 28
    params = make_params(k_par, LATENT_DIM, N_CLASSES, SLEN)
    B1 = 20
    lat1 = jax.random.normal(k_lat, (B1, LATENT_DIM), jnp.float32)
    lab1 = jax.nn.one_hot(
        jax.random.randint(k_lab, (B1,), 0, N_CLASSES), N_CLASSES,
        dtype=jnp.float32)
    out1 = jax.block_until_ready(mlp_decoder_forward(lat1, lab1, params, SLEN))
    ref1 = mlp_decoder_reference(lat1, lab1, params, SLEN)
    assert out1.shape == (B1, SLEN, SLEN)
    assert bool(jnp.all((out1 >= 0.0) & (out1 <= 1.0)))
    np.testing.assert_allclose(np.asarray(out1), np.asarray(ref1), atol=3e-2)

    # Case 2: smaller image, larger batch -> 2-step parallel batch grid
    # (both TensorCores on v7x, single-step overhead amortized elsewhere).
    SLEN2 = 16
    params2 = make_params(jax.random.PRNGKey(3), LATENT_DIM, N_CLASSES, SLEN2)
    B2 = 600
    lat2 = jax.random.normal(jax.random.PRNGKey(1), (B2, LATENT_DIM), jnp.float32)
    lab2 = jax.nn.one_hot(
        jax.random.randint(jax.random.PRNGKey(2), (B2,), 0, N_CLASSES), N_CLASSES,
        dtype=jnp.float32)
    out2 = jax.block_until_ready(mlp_decoder_forward(lat2, lab2, params2, SLEN2))
    ref2 = mlp_decoder_reference(lat2, lab2, params2, SLEN2)
    assert out2.shape == (B2, SLEN2, SLEN2)
    np.testing.assert_allclose(np.asarray(out2), np.asarray(ref2), atol=3e-2)

    print("KERNEL_OK")
</pallas_src>

<mosaic_0001>
module attributes {stable_mosaic.version = 11 : i64} {
  func.func @_decoder_kernel(%arg0: i32, %arg1: memref<24x18xbf16, #tpu.memory_space<vmem>>, %arg2: memref<18x128xbf16, #tpu.memory_space<vmem>>, %arg3: memref<1x128xf32, #tpu.memory_space<vmem>>, %arg4: memref<128x128xbf16, #tpu.memory_space<vmem>>, %arg5: memref<1x128xf32, #tpu.memory_space<vmem>>, %arg6: memref<128x896xbf16, #tpu.memory_space<vmem>>, %arg7: memref<1x896xf32, #tpu.memory_space<vmem>>, %arg8: memref<24x896xbf16, #tpu.memory_space<vmem>>) attributes {dimension_semantics = [#tpu.dimension_semantics<parallel>], iteration_bounds = array<i64: 1>, scalar_prefetch = 0 : i64, scratch_operands = 0 : i64, tpu.core_type = #tpu.core_type<tc>, window_params = [{transform_indices = @transform_0, window_bounds = array<i64: 24, 18>}, {pipeline_mode = #tpu.pipeline_mode<synchronous>, transform_indices = @transform_1, window_bounds = array<i64: 18, 128>}, {pipeline_mode = #tpu.pipeline_mode<synchronous>, transform_indices = @transform_2, window_bounds = array<i64: 1, 128>}, {pipeline_mode = #tpu.pipeline_mode<synchronous>, transform_indices = @transform_3, window_bounds = array<i64: 128, 128>}, {pipeline_mode = #tpu.pipeline_mode<synchronous>, transform_indices = @transform_4, window_bounds = array<i64: 1, 128>}, {pipeline_mode = #tpu.pipeline_mode<synchronous>, transform_indices = @transform_5, window_bounds = array<i64: 128, 896>}, {pipeline_mode = #tpu.pipeline_mode<synchronous>, transform_indices = @transform_6, window_bounds = array<i64: 1, 896>}, {transform_indices = @transform_7, window_bounds = array<i64: 24, 896>}]} {
    %c0 = arith.constant 0 : index
    %c0_0 = arith.constant 0 : index
    %0 = vector.load %arg1[%c0, %c0_0] : memref<24x18xbf16, #tpu.memory_space<vmem>>, vector<24x18xbf16>
    %c0_1 = arith.constant 0 : index
    %c0_2 = arith.constant 0 : index
    %1 = vector.load %arg2[%c0_1, %c0_2] : memref<18x128xbf16, #tpu.memory_space<vmem>>, vector<18x128xbf16>
    %cst = arith.constant dense<0.000000e+00> : vector<24x128xf32>
    %2 = tpu.matmul %0, %1, %cst {dimension_numbers = #tpu.dot_dimension_numbers<[1], [0], [0], [1], [0, 0, 1, 1], [], []>} : vector<24x18xbf16>, vector<18x128xbf16>, vector<24x128xf32> -> vector<24x128xf32>
    %c0_3 = arith.constant 0 : index
    %c0_4 = arith.constant 0 : index
    %3 = vector.load %arg3[%c0_3, %c0_4] : memref<1x128xf32, #tpu.memory_space<vmem>>, vector<1x128xf32>
    %4 = vector.broadcast %3 : vector<1x128xf32> to vector<24x128xf32>
    %5 = arith.addf %2, %4 : vector<24x128xf32>
    %cst_5 = arith.constant 0.000000e+00 : f32
    %6 = vector.broadcast %cst_5 : f32 to vector<24x128xf32>
    %7 = arith.maximumf %5, %6 : vector<24x128xf32>
    %8 = arith.truncf %7 : vector<24x128xf32> to vector<24x128xbf16>
    %c0_6 = arith.constant 0 : index
    %c0_7 = arith.constant 0 : index
    %9 = vector.load %arg4[%c0_6, %c0_7] : memref<128x128xbf16, #tpu.memory_space<vmem>>, vector<128x128xbf16>
    %cst_8 = arith.constant dense<0.000000e+00> : vector<24x128xf32>
    %10 = tpu.matmul %8, %9, %cst_8 {dimension_numbers = #tpu.dot_dimension_numbers<[1], [0], [0], [1], [0, 0, 1, 1], [], []>} : vector<24x128xbf16>, vector<128x128xbf16>, vector<24x128xf32> -> vector<24x128xf32>
    %c0_9 = arith.constant 0 : index
    %c0_10 = arith.constant 0 : index
    %11 = vector.load %arg5[%c0_9, %c0_10] : memref<1x128xf32, #tpu.memory_space<vmem>>, vector<1x128xf32>
    %12 = vector.broadcast %11 : vector<1x128xf32> to vector<24x128xf32>
    %13 = arith.addf %10, %12 : vector<24x128xf32>
    %cst_11 = arith.constant 0.000000e+00 : f32
    %14 = vector.broadcast %cst_11 : f32 to vector<24x128xf32>
    %15 = arith.maximumf %13, %14 : vector<24x128xf32>
    %16 = arith.truncf %15 : vector<24x128xf32> to vector<24x128xbf16>
    %c0_12 = arith.constant 0 : index
    %c0_13 = arith.constant 0 : index
    %17 = vector.load %arg6[%c0_12, %c0_13] : memref<128x896xbf16, #tpu.memory_space<vmem>>, vector<128x896xbf16>
    %cst_14 = arith.constant dense<0.000000e+00> : vector<24x896xf32>
    %18 = tpu.matmul %16, %17, %cst_14 {dimension_numbers = #tpu.dot_dimension_numbers<[1], [0], [0], [1], [0, 0, 1, 1], [], []>} : vector<24x128xbf16>, vector<128x896xbf16>, vector<24x896xf32> -> vector<24x896xf32>
    %c0_15 = arith.constant 0 : index
    %c0_16 = arith.constant 0 : index
    %19 = vector.load %arg7[%c0_15, %c0_16] : memref<1x896xf32, #tpu.memory_space<vmem>>, vector<1x896xf32>
    %20 = vector.broadcast %19 : vector<1x896xf32> to vector<24x896xf32>
    %21 = arith.addf %18, %20 : vector<24x896xf32>
    %22 = arith.negf %21 : vector<24x896xf32>
    %23 = math.exp %22 : vector<24x896xf32>
    %cst_17 = arith.constant 1.000000e+00 : f32
    %24 = vector.broadcast %cst_17 : f32 to vector<24x896xf32>
    %25 = arith.addf %24, %23 : vector<24x896xf32>
    %26 = arith.divf %24, %25 : vector<24x896xf32>
    %27 = arith.truncf %26 : vector<24x896xf32> to vector<24x896xbf16>
    %c0_18 = arith.constant 0 : index
    %c0_19 = arith.constant 0 : index
    %28 = vector.load %arg8[%c0_18, %c0_19] : memref<24x896xbf16, #tpu.memory_space<vmem>>, vector<24x896xbf16>
    tpu.vector_store %arg8[%c0_18, %c0_19], %27 {strides = array<i32>} : memref<24x896xbf16, #tpu.memory_space<vmem>>, vector<24x896xbf16>,
    return
  }
  func.func @transform_0(%arg0: i32) -> (i32, i32) {
    %c0_i32 = arith.constant 0 : i32
    %c0_i32_0 = arith.constant 0 : i32
    return %arg0, %c0_i32 : i32, i32
  }
  func.func @transform_1(%arg0: i32) -> (i32, i32) {
    %c0_i32 = arith.constant 0 : i32
    %c0_i32_0 = arith.constant 0 : i32
    %c0_i32_1 = arith.constant 0 : i32
    return %c0_i32, %c0_i32_0 : i32, i32
  }
  func.func @transform_2(%arg0: i32) -> (i32, i32) {
    %c0_i32 = arith.constant 0 : i32
    %c0_i32_0 = arith.constant 0 : i32
    %c0_i32_1 = arith.constant 0 : i32
    return %c0_i32, %c0_i32_0 : i32, i32
  }
  func.func @transform_3(%arg0: i32) -> (i32, i32) {
    %c0_i32 = arith.constant 0 : i32
    %c0_i32_0 = arith.constant 0 : i32
    %c0_i32_1 = arith.constant 0 : i32
    return %c0_i32, %c0_i32_0 : i32, i32
  }
  func.func @transform_4(%arg0: i32) -> (i32, i32) {
    %c0_i32 = arith.constant 0 : i32
    %c0_i32_0 = arith.constant 0 : i32
    %c0_i32_1 = arith.constant 0 : i32
    return %c0_i32, %c0_i32_0 : i32, i32
  }
  func.func @transform_5(%arg0: i32) -> (i32, i32) {
    %c0_i32 = arith.constant 0 : i32
    %c0_i32_0 = arith.constant 0 : i32
    %c0_i32_1 = arith.constant 0 : i32
    return %c0_i32, %c0_i32_0 : i32, i32
  }
  func.func @transform_6(%arg0: i32) -> (i32, i32) {
    %c0_i32 = arith.constant 0 : i32
    %c0_i32_0 = arith.constant 0 : i32
    %c0_i32_1 = arith.constant 0 : i32
    return %c0_i32, %c0_i32_0 : i32, i32
  }
  func.func @transform_7(%arg0: i32) -> (i32, i32) {
    %c0_i32 = arith.constant 0 : i32
    %c0_i32_0 = arith.constant 0 : i32
    return %arg0, %c0_i32 : i32, i32
  }
}

</mosaic_0001>

<llo_original>
// kernel: mlp_decoder_forward.1
$region0: #{mlp_decoder_forward.1}
  #allocation0 [shape = 'u32[]', space=smem, size = 0x4, offset = 0x4, fixed_abs, tag = 'smem constant byte address 0x4 - core index']
  #allocation1 [shape = 'u32[72,128]{1,0:T(1,128)}', space=vmem, size = 0x9000, scoped, tag = 'internal scratch']
  %s0 = inlined_call_operand.vmem [shape: bf16[24,18], index: 0, kind: input, shape index: {}]
  %s1 = inlined_call_operand.vmem [shape: bf16[18,128], index: 1, kind: input, shape index: {}]
  %s2 = inlined_call_operand.vmem [shape: f32[1,128], index: 2, kind: input, shape index: {}]
  %s3 = inlined_call_operand.vmem [shape: bf16[128,128], index: 3, kind: input, shape index: {}]
  %s4 = inlined_call_operand.vmem [shape: f32[1,128], index: 4, kind: input, shape index: {}]
  %s5 = inlined_call_operand.hbm [shape: bf16[128,896], index: 5, kind: input, shape index: {}]
  %s6 = inlined_call_operand.vmem [shape: f32[1,896], index: 6, kind: input, shape index: {}]
  %s7 = inlined_call_operand.vmem [shape: bf16[24,896], index: 7, kind: output, shape index: {}]
  %s8 = sld [smem:[#allocation0]]
  $region42: #{mlp_decoder_forward.1} parent=0
    _
  %s10 = ssub.s32 1, %s8
  %s11 = scalar_select 0, %s10, %s8
  $region1: #{mlp_decoder_forward.1} parent=0
    #allocation2 [shape = 'u8[229376]{0}', space=vmem, size = 0x38000, scoped, tag = 'input window, operand 5, single buffered']
    #allocation3 [shape = 's32[1]{0}', space=sflag, size = 0x4, scoped, tag = 'scoped memory for mlp_decoder_forward.1']
    %12 = vsyncpa [#allocation3], 0
    // Predicated region
    $region2: #{mlp_decoder_forward.1} parent=1 // pred_check
      _
    $region3: #{mlp_decoder_forward.1} parent=1 // pred_check_branch
      %14 = sbr.rel (0) target = $region5
    $region4: #{mlp_decoder_forward.1} parent=1 // pred_region
      _
    $region5: #{mlp_decoder_forward.1} parent=1 // pred_fallthru
      _
    // Predicated region
    $region6: #{mlp_decoder_forward.1} parent=1 // pred_check
      _
    $region7: #{mlp_decoder_forward.1} parent=1 // pred_check_branch
      %16 = sbr.rel (0) target = $region9
    $region8: #{mlp_decoder_forward.1} parent=1 // pred_region
      _
    $region9: #{mlp_decoder_forward.1} parent=1 // pred_fallthru
      _
    // Predicated region
    $region10: #{mlp_decoder_forward.1} parent=1 // pred_check
      _
    $region11: #{mlp_decoder_forward.1} parent=1 // pred_check_branch
      %18 = sbr.rel (0) target = $region13
    $region12: #{mlp_decoder_forward.1} parent=1 // pred_region
      _
    $region13: #{mlp_decoder_forward.1} parent=1 // pred_fallthru
      _
    // Predicated region
    $region14: #{mlp_decoder_forward.1} parent=1 // pred_check
      _
    $region15: #{mlp_decoder_forward.1} parent=1 // pred_check_branch
      %20 = sbr.rel (0) target = $region17
    $region16: #{mlp_decoder_forward.1} parent=1 // pred_region
      _
    $region17: #{mlp_decoder_forward.1} parent=1 // pred_fallthru
      _
    // Predicated region
    $region18: #{mlp_decoder_forward.1} parent=1 // pred_check
      _
    $region19: #{mlp_decoder_forward.1} parent=1 // pred_check_branch
      %22 = sbr.rel (0) target = $region21
    $region20: #{mlp_decoder_forward.1} parent=1 // pred_region
      _
    $region21: #{mlp_decoder_forward.1} parent=1 // pred_fallthru
      _
    // Predicated region
    $region22: #{mlp_decoder_forward.1} parent=1 // pred_check
      _
    $region23: #{mlp_decoder_forward.1} parent=1 // pred_check_branch
      %24 = sbr.rel (0) target = $region25
    $region24: #{mlp_decoder_forward.1} parent=1 // pred_region
      %26 = vsyncadd [#allocation3], 0
      %s27 = sshll.u32 %s5, 4
      %s28 = int_to_ptr.hbm [resolvable:$true] %s27
      %s29 = sshll.u32 [#allocation2], 4
      %s30 = int_to_ptr.vmem [resolvable:$true] %s29
      %35 = dma.hbm_to_vmem [thread:$0]  %s28, 7168, %s30, [#allocation3], 448, 448, 28
    $region25: #{mlp_decoder_forward.1} parent=1 // pred_fallthru
      _
    // Predicated region
    $region26: #{mlp_decoder_forward.1} parent=1 // pred_check
      _
    $region27: #{mlp_decoder_forward.1} parent=1 // pred_check_branch
      %37 = sbr.rel (0) target = $region29
    $region28: #{mlp_decoder_forward.1} parent=1 // pred_region
      _
    $region29: #{mlp_decoder_forward.1} parent=1 // pred_fallthru
      _
    // Predicated region
    $region30: #{mlp_decoder_forward.1} parent=1 // pred_check
      _
    $region31: #{mlp_decoder_forward.1} parent=1 // pred_check_branch
      %39 = sbr.rel (0) target = $region33
    $region32: #{mlp_decoder_forward.1} parent=1 // pred_region
      %41 = dma.done [#allocation3], 7168
    $region33: #{mlp_decoder_forward.1} parent=1 // pred_fallthru
      _
    %v43 = vld [vmem:[%s0] sm:$0xf]
    %v44 = vld [vmem:[%s0 + $0x4] sm:$0xf]
    %v45 = vld [vmem:[%s0 + $0x8] sm:$0xf]
    %v46 = vld [vmem:[%s1] sm:$0xf]
    %v47 = vld [vmem:[%s1 + $0x4] sm:$0xf]
    %v48 = vld [vmem:[%s1 + $0x8] sm:$0x1]
    %v49 = vld [vmem:[%s2] sm:$0x1]
    %v51 = vperm.slane %v49, 0
    %v56 = vunpack.c.l.b16 %v43
    %v57 = vunpack.c.l.b16 %v44
    %v58 = vunpack.c.l.b16 %v45
    %v59 = vpack.c.b16 %v57, %v56
    %v60 = vpack.c.b16 %v58, %v58
    %v64 = vunpack.c.l.b16 %v46
    %v65 = vunpack.c.l.b16 %v47
    %v66 = vunpack.c.l.b16 %v48
    %v67 = vpack.c.b16 %v65, %v64
    %v68 = vpack.c.b16 %v66, %v66
    %vm70 = vcmask 146432
    %v72 = vsel %vm70, %v59, 0
    %v75 = vsel %vm70, %v60, 0
    %vm77 = vcmask 1040384
    %v79 = vsel %vm77, %v68, 0
    %81 = vmatpush.bf16.msra.mxu0 0
    %82 = vmatpush.bf16.msra.mxu0 0
    %83 = vmatpush.bf16.msra.mxu0 0
    %84 = vmatpush.bf16.msra.mxu0 0
    %85 = vmatpush.bf16.msra.mxu0 0
    %86 = vmatpush.bf16.msra.mxu0 0
    %87 = vmatpush.bf16.msra.mxu0 %v79
    %88 = vmatpush.bf16.msra.mxu0 %v67
    %89 = vmatmul.bf16.gmra.mxu0 %v72
    %v90 = vpop.f32.mrf.mxu0
    %v91 = vadd.f32 %v51, %v90
    %v92 = vpop.f32.mrf.mxu0
    %v93 = vadd.f32 %v51, %v92
    %94 = vmatmul.bf16.gmra.mxu0 %v75
    %v95 = vpop.f32.mrf.mxu0
    %v96 = vadd.f32 %v51, %v95
    %v97 = vpop.f32.mrf.mxu0
    %98 = vdwg.mxu0
    %v99 = vmax.f32 %v91, 0.0
    %v100 = vmax.f32 %v93, 0.0
    %v101 = vmax.f32 %v96, 0.0
    %v102 = vpack.c.bf16 %v100, %v99
    %v103 = vpack.c.bf16 %v101, %v101
    %v104 = vld [vmem:[%s3] sm:$0xf]
    %v105 = vld [vmem:[%s3 + $0x4] sm:$0xf]
    %v106 = vld [vmem:[%s3 + $0x8] sm:$0xf]
    %v107 = vld [vmem:[%s3 + $0xc] sm:$0xf]
    %v108 = vld [vmem:[%s3 + $0x10] sm:$0xf]
    %v109 = vld [vmem:[%s3 + $0x14] sm:$0xf]
    %v110 = vld [vmem:[%s3 + $0x18] sm:$0xf]
    %v111 = vld [vmem:[%s3 + $0x1c] sm:$0xf]
    %v112 = vld [vmem:[%s3 + $0x20] sm:$0xf]
    %v113 = vld [vmem:[%s3 + $0x24] sm:$0xf]
    %v114 = vld [vmem:[%s3 + $0x28] sm:$0xf]
    %v115 = vld [vmem:[%s3 + $0x2c] sm:$0xf]
    %v116 = vld [vmem:[%s3 + $0x30] sm:$0xf]
    %v117 = vld [vmem:[%s3 + $0x34] sm:$0xf]
    %v118 = vld [vmem:[%s3 + $0x38] sm:$0xf]
    %v119 = vld [vmem:[%s3 + $0x3c] sm:$0xf]
    %v120 = vld [vmem:[%s4] sm:$0x1]
    %v122 = vperm.slane %v120, 0
    %v140 = vunpack.c.l.b16 %v104
    %v141 = vunpack.c.l.b16 %v105
    %v142 = vunpack.c.l.b16 %v106
    %v143 = vunpack.c.l.b16 %v107
    %v144 = vunpack.c.l.b16 %v108
    %v145 = vunpack.c.l.b16 %v109
    %v146 = vunpack.c.l.b16 %v110
    %v147 = vunpack.c.l.b16 %v111
    %v148 = vunpack.c.l.b16 %v112
    %v149 = vunpack.c.l.b16 %v113
    %v150 = vunpack.c.l.b16 %v114
    %v151 = vunpack.c.l.b16 %v115
    %v152 = vunpack.c.l.b16 %v116
    %v153 = vunpack.c.l.b16 %v117
    %v154 = vunpack.c.l.b16 %v118
    %v155 = vunpack.c.l.b16 %v119
    %v156 = vpack.c.b16 %v141, %v140
    %v157 = vpack.c.b16 %v143, %v142
    %v158 = vpack.c.b16 %v145, %v144
    %v159 = vpack.c.b16 %v147, %v146
    %v160 = vpack.c.b16 %v149, %v148
    %v161 = vpack.c.b16 %v151, %v150
    %v162 = vpack.c.b16 %v153, %v152
    %v163 = vpack.c.b16 %v155, %v154
    %172 = vmatpush.bf16.msra.mxu0 %v163
    %173 = vmatpush.bf16.msra.mxu0 %v162
    %174 = vmatpush.bf16.msra.mxu0 %v161
    %175 = vmatpush.bf16.msra.mxu0 %v160
    %176 = vmatpush.bf16.msra.mxu0 %v159
    %177 = vmatpush.bf16.msra.mxu0 %v158
    %178 = vmatpush.bf16.msra.mxu0 %v157
    %179 = vmatpush.bf16.msra.mxu0 %v156
    %180 = vmatmul.bf16.gmra.mxu0 %v102
    %v181 = vpop.f32.mrf.mxu0
    %v182 = vadd.f32 %v122, %v181
    %v183 = vpop.f32.mrf.mxu0
    %v184 = vadd.f32 %v122, %v183
    %185 = vmatmul.bf16.gmra.mxu0 %v103
    %v186 = vpop.f32.mrf.mxu0
    %v187 = vadd.f32 %v122, %v186
    %v188 = vpop.f32.mrf.mxu0
    %189 = vdwg.mxu0
    %v190 = vmax.f32 %v182, 0.0
    %v191 = vmax.f32 %v184, 0.0
    %v192 = vmax.f32 %v187, 0.0
    %v193 = vpack.c.bf16 %v191, %v190
    %v194 = vpack.c.bf16 %v192, %v192
    %v195 = vld [vmem:[#allocation2] sm:$0xff]
    %v196 = vld [vmem:[#allocation2 + $0x8] sm:$0xff]
    %v197 = vld [vmem:[#allocation2 + $0x10] sm:$0xff]
    %v198 = vld [vmem:[#allocation2 + $0x18] sm:$0xf]
    %v199 = vld [vmem:[#allocation2 + $0x1c] sm:$0xff]
    %v200 = vld [vmem:[#allocation2 + $0x24] sm:$0xff]
    %v201 = vld [vmem:[#allocation2 + $0x2c] sm:$0xff]
    %v202 = vld [vmem:[#allocation2 + $0x34] sm:$0xf]
    %v203 = vld [vmem:[#allocation2 + $0x38] sm:$0xff]
    %v204 = vld [vmem:[#allocation2 + $0x40] sm:$0xff]
    %v205 = vld [vmem:[#allocation2 + $0x48] sm:$0xff]
    %v206 = vld [vmem:[#allocation2 + $0x50] sm:$0xf]
    %v207 = vld [vmem:[#allocation2 + $0x54] sm:$0xff]
    %v208 = vld [vmem:[#allocation2 + $0x5c] sm:$0xff]
    %v209 = vld [vmem:[#allocation2 + $0x64] sm:$0xff]
    %v210 = vld [vmem:[#allocation2 + $0x6c] sm:$0xf]
    %v211 = vld [vmem:[#allocation2 + $0x70] sm:$0xff]
    %v212 = vld [vmem:[#allocation2 + $0x78] sm:$0xff]
    %v213 = vld [vmem:[#allocation2 + $0x80] sm:$0xff]
    %v214 = vld [vmem:[#allocation2 + $0x88] sm:$0xf]
    %v215 = vld [vmem:[#allocation2 + $0x8c] sm:$0xff]
    %v216 = vld [vmem:[#allocation2 + $0x94] sm:$0xff]
    %v217 = vld [vmem:[#allocation2 + $0x9c] sm:$0xff]
    %v218 = vld [vmem:[#allocation2 + $0xa4] sm:$0xf]
    %v219 = vld [vmem:[#allocation2 + $0xa8] sm:$0xff]
    %v220 = vld [vmem:[#allocation2 + $0xb0] sm:$0xff]
    %v221 = vld [vmem:[#allocation2 + $0xb8] sm:$0xff]
    %v222 = vld [vmem:[#allocation2 + $0xc0] sm:$0xf]
    %v223 = vld [vmem:[#allocation2 + $0xc4] sm:$0xff]
    %v224 = vld [vmem:[#allocation2 + $0xcc] sm:$0xff]
    %v225 = vld [vmem:[#allocation2 + $0xd4] sm:$0xff]
    %v226 = vld [vmem:[#allocation2 + $0xdc] sm:$0xf]
    %v227 = vld [vmem:[#allocation2 + $0xe0] sm:$0xff]
    %v228 = vld [vmem:[#allocation2 + $0xe8] sm:$0xff]
    %v229 = vld [vmem:[#allocation2 + $0xf0] sm:$0xff]
    %v230 = vld [vmem:[#allocation2 + $0xf8] sm:$0xf]
    %v231 = vld [vmem:[#allocation2 + $0xfc] sm:$0xff]
    %v232 = vld [vmem:[#allocation2 + $0x104] sm:$0xff]
    %v233 = vld [vmem:[#allocation2 + $0x10c] sm:$0xff]
    %v234 = vld [vmem:[#allocation2 + $0x114] sm:$0xf]
    %v235 = vld [vmem:[#allocation2 + $0x118] sm:$0xff]
    %v236 = vld [vmem:[#allocation2 + $0x120] sm:$0xff]
    %v237 = vld [vmem:[#allocation2 + $0x128] sm:$0xff]
    %v238 = vld [vmem:[#allocation2 + $0x130] sm:$0xf]
    %v239 = vld [vmem:[#allocation2 + $0x134] sm:$0xff]
    %v240 = vld [vmem:[#allocation2 + $0x13c] sm:$0xff]
    %v241 = vld [vmem:[#allocation2 + $0x144] sm:$0xff]
    %v242 = vld [vmem:[#allocation2 + $0x14c] sm:$0xf]
    %v243 = vld [vmem:[#allocation2 + $0x150] sm:$0xff]
    %v244 = vld [vmem:[#allocation2 + $0x158] sm:$0xff]
    %v245 = vld [vmem:[#allocation2 + $0x160] sm:$0xff]
    %v246 = vld [vmem:[#allocation2 + $0x168] sm:$0xf]
    %v247 = vld [vmem:[#allocation2 + $0x16c] sm:$0xff]
    %v248 = vld [vmem:[#allocation2 + $0x174] sm:$0xff]
    %v249 = vld [vmem:[#allocation2 + $0x17c] sm:$0xff]
    %v250 = vld [vmem:[#allocation2 + $0x184] sm:$0xf]
    %v251 = vld [vmem:[#allocation2 + $0x188] sm:$0xff]
    %v252 = vld [vmem:[#allocation2 + $0x190] sm:$0xff]
    %v253 = vld [vmem:[#allocation2 + $0x198] sm:$0xff]
    %v254 = vld [vmem:[#allocation2 + $0x1a0] sm:$0xf]
    %v255 = vld [vmem:[#allocation2 + $0x1a4] sm:$0xff]
    %v256 = vld [vmem:[#allocation2 + $0x1ac] sm:$0xff]
    %v257 = vld [vmem:[#allocation2 + $0x1b4] sm:$0xff]
    %v258 = vld [vmem:[#allocation2 + $0x1bc] sm:$0xf]
    %v259 = vld [vmem:[%s6] sm:$0xff]
    %v261 = vperm.slane %v259, 0
    %v262 = vperm.slane %v259, 1
    %v263 = vperm.slane %v259, 2
    %v264 = vperm.slane %v259, 3
    %v265 = vperm.slane %v259, 4
    %v266 = vperm.slane %v259, 5
    %v267 = vperm.slane %v259, 6
    %v339 = vunpack.c.l.b16 %v195
    %v340 = vunpack.c.h.b16 %v195
    %v341 = vunpack.c.l.b16 %v196
    %v342 = vunpack.c.h.b16 %v196
    %v343 = vunpack.c.l.b16 %v197
    %v344 = vunpack.c.h.b16 %v197
    %v345 = vunpack.c.l.b16 %v198
    %v346 = vunpack.c.l.b16 %v199
    %v347 = vunpack.c.h.b16 %v199
    %v348 = vunpack.c.l.b16 %v200
    %v349 = vunpack.c.h.b16 %v200
    %v350 = vunpack.c.l.b16 %v201
    %v351 = vunpack.c.h.b16 %v201
    %v352 = vunpack.c.l.b16 %v202
    %v353 = vunpack.c.l.b16 %v203
    %v354 = vunpack.c.h.b16 %v203
    %v355 = vunpack.c.l.b16 %v204
    %v356 = vunpack.c.h.b16 %v204
    %v357 = vunpack.c.l.b16 %v205
    %v358 = vunpack.c.h.b16 %v205
    %v359 = vunpack.c.l.b16 %v206
    %v360 = vunpack.c.l.b16 %v207
    %v361 = vunpack.c.h.b16 %v207
    %v362 = vunpack.c.l.b16 %v208
    %v363 = vunpack.c.h.b16 %v208
    %v364 = vunpack.c.l.b16 %v209
    %v365 = vunpack.c.h.b16 %v209
    %v366 = vunpack.c.l.b16 %v210
    %v367 = vunpack.c.l.b16 %v211
    %v368 = vunpack.c.h.b16 %v211
    %v369 = vunpack.c.l.b16 %v212
    %v370 = vunpack.c.h.b16 %v212
    %v371 = vunpack.c.l.b16 %v213
    %v372 = vunpack.c.h.b16 %v213
    %v373 = vunpack.c.l.b16 %v214
    %v374 = vunpack.c.l.b16 %v215
    %v375 = vunpack.c.h.b16 %v215
    %v376 = vunpack.c.l.b16 %v216
    %v377 = vunpack.c.h.b16 %v216
    %v378 = vunpack.c.l.b16 %v217
    %v379 = vunpack.c.h.b16 %v217
    %v380 = vunpack.c.l.b16 %v218
    %v381 = vunpack.c.l.b16 %v219
    %v382 = vunpack.c.h.b16 %v219
    %v383 = vunpack.c.l.b16 %v220
    %v384 = vunpack.c.h.b16 %v220
    %v385 = vunpack.c.l.b16 %v221
    %v386 = vunpack.c.h.b16 %v221
    %v387 = vunpack.c.l.b16 %v222
    %v388 = vunpack.c.l.b16 %v223
    %v389 = vunpack.c.h.b16 %v223
    %v390 = vunpack.c.l.b16 %v224
    %v391 = vunpack.c.h.b16 %v224
    %v392 = vunpack.c.l.b16 %v225
    %v393 = vunpack.c.h.b16 %v225
    %v394 = vunpack.c.l.b16 %v226
    %v395 = vunpack.c.l.b16 %v227
    %v396 = vunpack.c.h.b16 %v227
    %v397 = vunpack.c.l.b16 %v228
    %v398 = vunpack.c.h.b16 %v228
    %v399 = vunpack.c.l.b16 %v229
    %v400 = vunpack.c.h.b16 %v229
    %v401 = vunpack.c.l.b16 %v230
    %v402 = vunpack.c.l.b16 %v231
    %v403 = vunpack.c.h.b16 %v231
    %v404 = vunpack.c.l.b16 %v232
    %v405 = vunpack.c.h.b16 %v232
    %v406 = vunpack.c.l.b16 %v233
    %v407 = vunpack.c.h.b16 %v233
    %v408 = vunpack.c.l.b16 %v234
    %v409 = vunpack.c.l.b16 %v235
    %v410 = vunpack.c.h.b16 %v235
    %v411 = vunpack.c.l.b16 %v236
    %v412 = vunpack.c.h.b16 %v236
    %v413 = vunpack.c.l.b16 %v237
    %v414 = vunpack.c.h.b16 %v237
    %v415 = vunpack.c.l.b16 %v238
    %v416 = vunpack.c.l.b16 %v239
    %v417 = vunpack.c.h.b16 %v239
    %v418 = vunpack.c.l.b16 %v240
    %v419 = vunpack.c.h.b16 %v240
    %v420 = vunpack.c.l.b16 %v241
    %v421 = vunpack.c.h.b16 %v241
    %v422 = vunpack.c.l.b16 %v242
    %v423 = vunpack.c.l.b16 %v243
    %v424 = vunpack.c.h.b16 %v243
    %v425 = vunpack.c.l.b16 %v244
    %v426 = vunpack.c.h.b16 %v244
    %v427 = vunpack.c.l.b16 %v245
    %v428 = vunpack.c.h.b16 %v245
    %v429 = vunpack.c.l.b16 %v246
    %v430 = vunpack.c.l.b16 %v247
    %v431 = vunpack.c.h.b16 %v247
    %v432 = vunpack.c.l.b16 %v248
    %v433 = vunpack.c.h.b16 %v248
    %v434 = vunpack.c.l.b16 %v249
    %v435 = vunpack.c.h.b16 %v249
    %v436 = vunpack.c.l.b16 %v250
    %v437 = vunpack.c.l.b16 %v251
    %v438 = vunpack.c.h.b16 %v251
    %v439 = vunpack.c.l.b16 %v252
    %v440 = vunpack.c.h.b16 %v252
    %v441 = vunpack.c.l.b16 %v253
    %v442 = vunpack.c.h.b16 %v253
    %v443 = vunpack.c.l.b16 %v254
    %v444 = vunpack.c.l.b16 %v255
    %v445 = vunpack.c.h.b16 %v255
    %v446 = vunpack.c.l.b16 %v256
    %v447 = vunpack.c.h.b16 %v256
    %v448 = vunpack.c.l.b16 %v257
    %v449 = vunpack.c.h.b16 %v257
    %v450 = vunpack.c.l.b16 %v258
    %v451 = vpack.c.b16 %v346, %v339
    %v452 = vpack.c.b16 %v347, %v340
    %v453 = vpack.c.b16 %v348, %v341
    %v454 = vpack.c.b16 %v349, %v342
    %v455 = vpack.c.b16 %v350, %v343
    %v456 = vpack.c.b16 %v351, %v344
    %v457 = vpack.c.b16 %v352, %v345
    %v458 = vpack.c.b16 %v360, %v353
    %v459 = vpack.c.b16 %v361, %v354
    %v460 = vpack.c.b16 %v362, %v355
    %v461 = vpack.c.b16 %v363, %v356
    %v462 = vpack.c.b16 %v364, %v357
    %v463 = vpack.c.b16 %v365, %v358
    %v464 = vpack.c.b16 %v366, %v359
    %v465 = vpack.c.b16 %v374, %v367
    %v466 = vpack.c.b16 %v375, %v368
    %v467 = vpack.c.b16 %v376, %v369
    %v468 = vpack.c.b16 %v377, %v370
    %v469 = vpack.c.b16 %v378, %v371
    %v470 = vpack.c.b16 %v379, %v372
    %v471 = vpack.c.b16 %v380, %v373
    %v472 = vpack.c.b16 %v388, %v381
    %v473 = vpack.c.b16 %v389, %v382
    %v474 = vpack.c.b16 %v390, %v383
    %v475 = vpack.c.b16 %v391, %v384
    %v476 = vpack.c.b16 %v392, %v385
    %v477 = vpack.c.b16 %v393, %v386
    %v478 = vpack.c.b16 %v394, %v387
    %v479 = vpack.c.b16 %v402, %v395
    %v480 = vpack.c.b16 %v403, %v396
    %v481 = vpack.c.b16 %v404, %v397
    %v482 = vpack.c.b16 %v405, %v398
    %v483 = vpack.c.b16 %v406, %v399
    %v484 = vpack.c.b16 %v407, %v400
    %v485 = vpack.c.b16 %v408, %v401
    %v486 = vpack.c.b16 %v416, %v409
    %v487 = vpack.c.b16 %v417, %v410
    %v488 = vpack.c.b16 %v418, %v411
    %v489 = vpack.c.b16 %v419, %v412
    %v490 = vpack.c.b16 %v420, %v413
    %v491 = vpack.c.b16 %v421, %v414
    %v492 = vpack.c.b16 %v422, %v415
    %v493 = vpack.c.b16 %v430, %v423
    %v494 = vpack.c.b16 %v431, %v424
    %v495 = vpack.c.b16 %v432, %v425
    %v496 = vpack.c.b16 %v433, %v426
    %v497 = vpack.c.b16 %v434, %v427
    %v498 = vpack.c.b16 %v435, %v428
    %v499 = vpack.c.b16 %v436, %v429
    %v500 = vpack.c.b16 %v444, %v437
    %v501 = vpack.c.b16 %v445, %v438
    %v502 = vpack.c.b16 %v446, %v439
    %v503 = vpack.c.b16 %v447, %v440
    %v504 = vpack.c.b16 %v448, %v441
    %v505 = vpack.c.b16 %v449, %v442
    %v506 = vpack.c.b16 %v450, %v443
    %563 = vmatpush.bf16.msra.mxu0 %v500
    %564 = vmatpush.bf16.msra.mxu0 %v493
    %565 = vmatpush.bf16.msra.mxu0 %v486
    %566 = vmatpush.bf16.msra.mxu0 %v479
    %567 = vmatpush.bf16.msra.mxu0 %v472
    %568 = vmatpush.bf16.msra.mxu0 %v465
    %569 = vmatpush.bf16.msra.mxu0 %v458
    %570 = vmatpush.bf16.msra.mxu0 %v451
    %571 = vmatmul.bf16.gmra.mxu0 %v193
    %v572 = vpop.f32.mrf.mxu0
    %v573 = vadd.f32 %v261, %v572
    %v574 = vpop.f32.mrf.mxu0
    %v575 = vadd.f32 %v261, %v574
    %576 = vmatmul.bf16.gmra.mxu0 %v194
    %v577 = vpop.f32.mrf.mxu0
    %v578 = vadd.f32 %v261, %v577
    %v579 = vpop.f32.mrf.mxu0
    %580 = vdwg.mxu0
    %581 = vmatpush.bf16.msra.mxu0 %v501
    %582 = vmatpush.bf16.msra.mxu0 %v494
    %583 = vmatpush.bf16.msra.mxu0 %v487
    %584 = vmatpush.bf16.msra.mxu0 %v480
    %585 = vmatpush.bf16.msra.mxu0 %v473
    %586 = vmatpush.bf16.msra.mxu0 %v466
    %587 = vmatpush.bf16.msra.mxu0 %v459
    %588 = vmatpush.bf16.msra.mxu0 %v452
    %589 = vmatmul.bf16.gmra.mxu0 %v193
    %v590 = vpop.f32.mrf.mxu0
    %v591 = vadd.f32 %v262, %v590
    %v592 = vpop.f32.mrf.mxu0
    %v593 = vadd.f32 %v262, %v592
    %594 = vmatmul.bf16.gmra.mxu0 %v194
    %v595 = vpop.f32.mrf.mxu0
    %v596 = vadd.f32 %v262, %v595
    %v597 = vpop.f32.mrf.mxu0
    %598 = vdwg.mxu0
    %599 = vmatpush.bf16.msra.mxu0 %v502
    %600 = vmatpush.bf16.msra.mxu0 %v495
    %601 = vmatpush.bf16.msra.mxu0 %v488
    %602 = vmatpush.bf16.msra.mxu0 %v481
    %603 = vmatpush.bf16.msra.mxu0 %v474
    %604 = vmatpush.bf16.msra.mxu0 %v467
    %605 = vmatpush.bf16.msra.mxu0 %v460
    %606 = vmatpush.bf16.msra.mxu0 %v453
    %607 = vmatmul.bf16.gmra.mxu0 %v193
    %v608 = vpop.f32.mrf.mxu0
    %v609 = vadd.f32 %v263, %v608
    %v610 = vpop.f32.mrf.mxu0
    %v611 = vadd.f32 %v263, %v610
    %612 = vmatmul.bf16.gmra.mxu0 %v194
    %v613 = vpop.f32.mrf.mxu0
    %v614 = vadd.f32 %v263, %v613
    %v615 = vpop.f32.mrf.mxu0
    %616 = vdwg.mxu0
    %617 = vmatpush.bf16.msra.mxu0 %v503
    %618 = vmatpush.bf16.msra.mxu0 %v496
    %619 = vmatpush.bf16.msra.mxu0 %v489
    %620 = vmatpush.bf16.msra.mxu0 %v482
    %621 = vmatpush.bf16.msra.mxu0 %v475
    %622 = vmatpush.bf16.msra.mxu0 %v468
    %623 = vmatpush.bf16.msra.mxu0 %v461
    %624 = vmatpush.bf16.msra.mxu0 %v454
    %625 = vmatmul.bf16.gmra.mxu0 %v193
    %v626 = vpop.f32.mrf.mxu0
    %v627 = vadd.f32 %v264, %v626
    %v628 = vpop.f32.mrf.mxu0
    %v629 = vadd.f32 %v264, %v628
    %630 = vmatmul.bf16.gmra.mxu0 %v194
    %v631 = vpop.f32.mrf.mxu0
    %v632 = vadd.f32 %v264, %v631
    %v633 = vpop.f32.mrf.mxu0
    %634 = vdwg.mxu0
    %635 = vmatpush.bf16.msra.mxu0 %v504
    %636 = vmatpush.bf16.msra.mxu0 %v497
    %637 = vmatpush.bf16.msra.mxu0 %v490
    %638 = vmatpush.bf16.msra.mxu0 %v483
    %639 = vmatpush.bf16.msra.mxu0 %v476
    %640 = vmatpush.bf16.msra.mxu0 %v469
    %641 = vmatpush.bf16.msra.mxu0 %v462
    %642 = vmatpush.bf16.msra.mxu0 %v455
    %643 = vmatmul.bf16.gmra.mxu0 %v193
    %v644 = vpop.f32.mrf.mxu0
    %v645 = vadd.f32 %v265, %v644
    %v646 = vpop.f32.mrf.mxu0
    %v647 = vadd.f32 %v265, %v646
    %648 = vmatmul.bf16.gmra.mxu0 %v194
    %v649 = vpop.f32.mrf.mxu0
    %v650 = vadd.f32 %v265, %v649
    %v651 = vpop.f32.mrf.mxu0
    %652 = vdwg.mxu0
    %653 = vmatpush.bf16.msra.mxu0 %v505
    %654 = vmatpush.bf16.msra.mxu0 %v498
    %655 = vmatpush.bf16.msra.mxu0 %v491
    %656 = vmatpush.bf16.msra.mxu0 %v484
    %657 = vmatpush.bf16.msra.mxu0 %v477
    %658 = vmatpush.bf16.msra.mxu0 %v470
    %659 = vmatpush.bf16.msra.mxu0 %v463
    %660 = vmatpush.bf16.msra.mxu0 %v456
    %661 = vmatmul.bf16.gmra.mxu0 %v193
    %v662 = vpop.f32.mrf.mxu0
    %v663 = vadd.f32 %v266, %v662
    %v664 = vpop.f32.mrf.mxu0
    %v665 = vadd.f32 %v266, %v664
    %666 = vmatmul.bf16.gmra.mxu0 %v194
    %v667 = vpop.f32.mrf.mxu0
    %v668 = vadd.f32 %v266, %v667
    %v669 = vpop.f32.mrf.mxu0
    %670 = vdwg.mxu0
    %671 = vmatpush.bf16.msra.mxu0 %v506
    %672 = vmatpush.bf16.msra.mxu0 %v499
    %673 = vmatpush.bf16.msra.mxu0 %v492
    %674 = vmatpush.bf16.msra.mxu0 %v485
    %675 = vmatpush.bf16.msra.mxu0 %v478
    %676 = vmatpush.bf16.msra.mxu0 %v471
    %677 = vmatpush.bf16.msra.mxu0 %v464
    %678 = vmatpush.bf16.msra.mxu0 %v457
    %679 = vmatmul.bf16.gmra.mxu0 %v193
    %v680 = vpop.f32.mrf.mxu0
    %v681 = vadd.f32 %v267, %v680
    %v682 = vpop.f32.mrf.mxu0
    %v683 = vadd.f32 %v267, %v682
    %684 = vmatmul.bf16.gmra.mxu0 %v194
    %v685 = vpop.f32.mrf.mxu0
    %v686 = vadd.f32 %v267, %v685
    %v687 = vpop.f32.mrf.mxu0
    %688 = vdwg.mxu0
    %v689 = vxor.u32 %v573, 2147483648
    %v690 = vxor.u32 %v591, 2147483648
    %v691 = vxor.u32 %v609, 2147483648
    %v692 = vxor.u32 %v627, 2147483648
    %v693 = vxor.u32 %v645, 2147483648
    %v694 = vxor.u32 %v663, 2147483648
    %v695 = vxor.u32 %v681, 2147483648
    %v696 = vxor.u32 %v575, 2147483648
    %v697 = vxor.u32 %v593, 2147483648
    %v698 = vxor.u32 %v611, 2147483648
    %v699 = vxor.u32 %v629, 2147483648
    %v700 = vxor.u32 %v647, 2147483648
    %v701 = vxor.u32 %v665, 2147483648
    %v702 = vxor.u32 %v683, 2147483648
    %v703 = vxor.u32 %v578, 2147483648
    %v704 = vxor.u32 %v596, 2147483648
    %v705 = vxor.u32 %v614, 2147483648
    %v706 = vxor.u32 %v632, 2147483648
    %v707 = vxor.u32 %v650, 2147483648
    %v708 = vxor.u32 %v668, 2147483648
    %v709 = vxor.u32 %v686, 2147483648
    %v710 = vmul.f32 %v689, 1.442695
    %v711 = vpow.pop %v710
    %v712 = vmul.f32 %v690, 1.442695
    %v713 = vpow.pop %v712
    %v714 = vmul.f32 %v691, 1.442695
    %v715 = vpow.pop %v714
    %v716 = vmul.f32 %v692, 1.442695
    %v717 = vpow.pop %v716
    %v718 = vmul.f32 %v693, 1.442695
    %v719 = vpow.pop %v718
    %v720 = vmul.f32 %v694, 1.442695
    %v721 = vpow.pop %v720
    %v722 = vmul.f32 %v695, 1.442695
    %v723 = vpow.pop %v722
    %v724 = vmul.f32 %v696, 1.442695
    %v725 = vpow.pop %v724
    %v726 = vmul.f32 %v697, 1.442695
    %v727 = vpow.pop %v726
    %v728 = vmul.f32 %v698, 1.442695
    %v729 = vpow.pop %v728
    %v730 = vmul.f32 %v699, 1.442695
    %v731 = vpow.pop %v730
    %v732 = vmul.f32 %v700, 1.442695
    %v733 = vpow.pop %v732
    %v734 = vmul.f32 %v701, 1.442695
    %v735 = vpow.pop %v734
    %v736 = vmul.f32 %v702, 1.442695
    %v737 = vpow.pop %v736
    %v738 = vmul.f32 %v703, 1.442695
    %v739 = vpow.pop %v738
    %v740 = vmul.f32 %v704, 1.442695
    %v741 = vpow.pop %v740
    %v742 = vmul.f32 %v705, 1.442695
    %v743 = vpow.pop %v742
    %v744 = vmul.f32 %v706, 1.442695
    %v745 = vpow.pop %v744
    %v746 = vmul.f32 %v707, 1.442695
    %v747 = vpow.pop %v746
    %v748 = vmul.f32 %v708, 1.442695
    %v749 = vpow.pop %v748
    %v750 = vmul.f32 %v709, 1.442695
    %v751 = vpow.pop %v750
    %v752 = vadd.f32 %v711, 1.0
    %v753 = vadd.f32 %v713, 1.0
    %v754 = vadd.f32 %v715, 1.0
    %v755 = vadd.f32 %v717, 1.0
    %v756 = vadd.f32 %v719, 1.0
    %v757 = vadd.f32 %v721, 1.0
    %v758 = vadd.f32 %v723, 1.0
    %v759 = vadd.f32 %v725, 1.0
    %v760 = vadd.f32 %v727, 1.0
    %v761 = vadd.f32 %v729, 1.0
    %v762 = vadd.f32 %v731, 1.0
    %v763 = vadd.f32 %v733, 1.0
    %v764 = vadd.f32 %v735, 1.0
    %v765 = vadd.f32 %v737, 1.0
    %v766 = vadd.f32 %v739, 1.0
    %v767 = vadd.f32 %v741, 1.0
    %v768 = vadd.f32 %v743, 1.0
    %v769 = vadd.f32 %v745, 1.0
    %v770 = vadd.f32 %v747, 1.0
    %v771 = vadd.f32 %v749, 1.0
    %v772 = vadd.f32 %v751, 1.0
    %v773 = vrcp.pop %v752
    %v774 = vmul.f32 %v752, %v773
    %v775 = vsub.f32 1.0, %v774
    %v776 = vmul.f32 %v773, %v775
    %v777 = vadd.f32 %v773, %v776
    %vm778 = vweird.f32 %v752
    %vm779 = vweird.f32 %v773
    %vm780 = vmor %vm778, %vm779
    %v781 = vsel %vm780, %v773, %v777
    %v782 = vand.u32 2147483647, %v752
    %vm783 = vcmp.eq.f32.partialorder %v782, 8.507059e+37
    %v784 = vand.u32 %v752, 2147483648
    %v785 = vor.u32 1.1754944e-38, %v784
    %v786 = vsel %vm783, %v785, %v781
    %v787 = vmul.f32 1.0, %v786
    %v788 = vrcp.pop %v753
    %v789 = vmul.f32 %v753, %v788
    %v790 = vsub.f32 1.0, %v789
    %v791 = vmul.f32 %v788, %v790
    %v792 = vadd.f32 %v788, %v791
    %vm793 = vweird.f32 %v753
    %vm794 = vweird.f32 %v788
    %vm795 = vmor %vm793, %vm794
    %v796 = vsel %vm795, %v788, %v792
    %v797 = vand.u32 2147483647, %v753
    %vm798 = vcmp.eq.f32.partialorder %v797, 8.507059e+37
    %v799 = vand.u32 %v753, 2147483648
    %v800 = vor.u32 1.1754944e-38, %v799
    %v801 = vsel %vm798, %v800, %v796
    %v802 = vmul.f32 1.0, %v801
    %v803 = vrcp.pop %v754
    %v804 = vmul.f32 %v754, %v803
    %v805 = vsub.f32 1.0, %v804
    %v806 = vmul.f32 %v803, %v805
    %v807 = vadd.f32 %v803, %v806
    %vm808 = vweird.f32 %v754
    %vm809 = vweird.f32 %v803
    %vm810 = vmor %vm808, %vm809
    %v811 = vsel %vm810, %v803, %v807
    %v812 = vand.u32 2147483647, %v754
    %vm813 = vcmp.eq.f32.partialorder %v812, 8.507059e+37
    %v814 = vand.u32 %v754, 2147483648
    %v815 = vor.u32 1.1754944e-38, %v814
    %v816 = vsel %vm813, %v815, %v811
    %v817 = vmul.f32 1.0, %v816
    %v818 = vrcp.pop %v755
    %v819 = vmul.f32 %v755, %v818
    %v820 = vsub.f32 1.0, %v819
    %v821 = vmul.f32 %v818, %v820
    %v822 = vadd.f32 %v818, %v821
    %vm823 = vweird.f32 %v755
    %vm824 = vweird.f32 %v818
    %vm825 = vmor %vm823, %vm824
    %v826 = vsel %vm825, %v818, %v822
    %v827 = vand.u32 2147483647, %v755
    %vm828 = vcmp.eq.f32.partialorder %v827, 8.507059e+37
    %v829 = vand.u32 %v755, 2147483648
    %v830 = vor.u32 1.1754944e-38, %v829
    %v831 = vsel %vm828, %v830, %v826
    %v832 = vmul.f32 1.0, %v831
    %v833 = vrcp.pop %v756
    %v834 = vmul.f32 %v756, %v833
    %v835 = vsub.f32 1.0, %v834
    %v836 = vmul.f32 %v833, %v835
    %v837 = vadd.f32 %v833, %v836
    %vm838 = vweird.f32 %v756
    %vm839 = vweird.f32 %v833
    %vm840 = vmor %vm838, %vm839
    %v841 = vsel %vm840, %v833, %v837
    %v842 = vand.u32 2147483647, %v756
    %vm843 = vcmp.eq.f32.partialorder %v842, 8.507059e+37
    %v844 = vand.u32 %v756, 2147483648
    %v845 = vor.u32 1.1754944e-38, %v844
    %v846 = vsel %vm843, %v845, %v841
    %v847 = vmul.f32 1.0, %v846
    %v848 = vrcp.pop %v757
    %v849 = vmul.f32 %v757, %v848
    %v850 = vsub.f32 1.0, %v849
    %v851 = vmul.f32 %v848, %v850
    %v852 = vadd.f32 %v848, %v851
    %vm853 = vweird.f32 %v757
    %vm854 = vweird.f32 %v848
    %vm855 = vmor %vm853, %vm854
    %v856 = vsel %vm855, %v848, %v852
    %v857 = vand.u32 2147483647, %v757
    %vm858 = vcmp.eq.f32.partialorder %v857, 8.507059e+37
    %v859 = vand.u32 %v757, 2147483648
    %v860 = vor.u32 1.1754944e-38, %v859
    %v861 = vsel %vm858, %v860, %v856
    %v862 = vmul.f32 1.0, %v861
    %v863 = vrcp.pop %v758
    %v864 = vmul.f32 %v758, %v863
    %v865 = vsub.f32 1.0, %v864
    %v866 = vmul.f32 %v863, %v865
    %v867 = vadd.f32 %v863, %v866
    %vm868 = vweird.f32 %v758
    %vm869 = vweird.f32 %v863
    %vm870 = vmor %vm868, %vm869
    %v871 = vsel %vm870, %v863, %v867
    %v872 = vand.u32 2147483647, %v758
    %vm873 = vcmp.eq.f32.partialorder %v872, 8.507059e+37
    %v874 = vand.u32 %v758, 2147483648
    %v875 = vor.u32 1.1754944e-38, %v874
    %v876 = vsel %vm873, %v875, %v871
    %v877 = vmul.f32 1.0, %v876
    %v878 = vrcp.pop %v759
    %v879 = vmul.f32 %v759, %v878
    %v880 = vsub.f32 1.0, %v879
    %v881 = vmul.f32 %v878, %v880
    %v882 = vadd.f32 %v878, %v881
    %vm883 = vweird.f32 %v759
    %vm884 = vweird.f32 %v878
    %vm885 = vmor %vm883, %vm884
    %v886 = vsel %vm885, %v878, %v882
    %v887 = vand.u32 2147483647, %v759
    %vm888 = vcmp.eq.f32.partialorder %v887, 8.507059e+37
    %v889 = vand.u32 %v759, 2147483648
    %v890 = vor.u32 1.1754944e-38, %v889
    %v891 = vsel %vm888, %v890, %v886
    %v892 = vmul.f32 1.0, %v891
    %v893 = vrcp.pop %v760
    %v894 = vmul.f32 %v760, %v893
    %v895 = vsub.f32 1.0, %v894
    %v896 = vmul.f32 %v893, %v895
    %v897 = vadd.f32 %v893, %v896
    %vm898 = vweird.f32 %v760
    %vm899 = vweird.f32 %v893
    %vm900 = vmor %vm898, %vm899
    %v901 = vsel %vm900, %v893, %v897
    %v902 = vand.u32 2147483647, %v760
    %vm903 = vcmp.eq.f32.partialorder %v902, 8.507059e+37
    %v904 = vand.u32 %v760, 2147483648
    %v905 = vor.u32 1.1754944e-38, %v904
    %v906 = vsel %vm903, %v905, %v901
    %v907 = vmul.f32 1.0, %v906
    %v908 = vrcp.pop %v761
    %v909 = vmul.f32 %v761, %v908
    %v910 = vsub.f32 1.0, %v909
    %v911 = vmul.f32 %v908, %v910
    %v912 = vadd.f32 %v908, %v911
    %vm913 = vweird.f32 %v761
    %vm914 = vweird.f32 %v908
    %vm915 = vmor %vm913, %vm914
    %v916 = vsel %vm915, %v908, %v912
    %v917 = vand.u32 2147483647, %v761
    %vm918 = vcmp.eq.f32.partialorder %v917, 8.507059e+37
    %v919 = vand.u32 %v761, 2147483648
    %v920 = vor.u32 1.1754944e-38, %v919
    %v921 = vsel %vm918, %v920, %v916
    %v922 = vmul.f32 1.0, %v921
    %v923 = vrcp.pop %v762
    %v924 = vmul.f32 %v762, %v923
    %v925 = vsub.f32 1.0, %v924
    %v926 = vmul.f32 %v923, %v925
    %v927 = vadd.f32 %v923, %v926
    %vm928 = vweird.f32 %v762
    %vm929 = vweird.f32 %v923
    %vm930 = vmor %vm928, %vm929
    %v931 = vsel %vm930, %v923, %v927
    %v932 = vand.u32 2147483647, %v762
    %vm933 = vcmp.eq.f32.partialorder %v932, 8.507059e+37
    %v934 = vand.u32 %v762, 2147483648
    %v935 = vor.u32 1.1754944e-38, %v934
    %v936 = vsel %vm933, %v935, %v931
    %v937 = vmul.f32 1.0, %v936
    %v938 = vrcp.pop %v763
    %v939 = vmul.f32 %v763, %v938
    %v940 = vsub.f32 1.0, %v939
    %v941 = vmul.f32 %v938, %v940
    %v942 = vadd.f32 %v938, %v941
    %vm943 = vweird.f32 %v763
    %vm944 = vweird.f32 %v938
    %vm945 = vmor %vm943, %vm944
    %v946 = vsel %vm945, %v938, %v942
    %v947 = vand.u32 2147483647, %v763
    %vm948 = vcmp.eq.f32.partialorder %v947, 8.507059e+37
    %v949 = vand.u32 %v763, 2147483648
    %v950 = vor.u32 1.1754944e-38, %v949
    %v951 = vsel %vm948, %v950, %v946
    %v952 = vmul.f32 1.0, %v951
    %v953 = vrcp.pop %v764
    %v954 = vmul.f32 %v764, %v953
    %v955 = vsub.f32 1.0, %v954
    %v956 = vmul.f32 %v953, %v955
    %v957 = vadd.f32 %v953, %v956
    %vm958 = vweird.f32 %v764
    %vm959 = vweird.f32 %v953
    %vm960 = vmor %vm958, %vm959
    %v961 = vsel %vm960, %v953, %v957
    %v962 = vand.u32 2147483647, %v764
    %vm963 = vcmp.eq.f32.partialorder %v962, 8.507059e+37
    %v964 = vand.u32 %v764, 2147483648
    %v965 = vor.u32 1.1754944e-38, %v964
    %v966 = vsel %vm963, %v965, %v961
    %v967 = vmul.f32 1.0, %v966
    %v968 = vrcp.pop %v765
    %v969 = vmul.f32 %v765, %v968
    %v970 = vsub.f32 1.0, %v969
    %v971 = vmul.f32 %v968, %v970
    %v972 = vadd.f32 %v968, %v971
    %vm973 = vweird.f32 %v765
    %vm974 = vweird.f32 %v968
    %vm975 = vmor %vm973, %vm974
    %v976 = vsel %vm975, %v968, %v972
    %v977 = vand.u32 2147483647, %v765
    %vm978 = vcmp.eq.f32.partialorder %v977, 8.507059e+37
    %v979 = vand.u32 %v765, 2147483648
    %v980 = vor.u32 1.1754944e-38, %v979
    %v981 = vsel %vm978, %v980, %v976
    %v982 = vmul.f32 1.0, %v981
    %v983 = vrcp.pop %v766
    %v984 = vmul.f32 %v766, %v983
    %v985 = vsub.f32 1.0, %v984
    %v986 = vmul.f32 %v983, %v985
    %v987 = vadd.f32 %v983, %v986
    %vm988 = vweird.f32 %v766
    %vm989 = vweird.f32 %v983
    %vm990 = vmor %vm988, %vm989
    %v991 = vsel %vm990, %v983, %v987
    %v992 = vand.u32 2147483647, %v766
    %vm993 = vcmp.eq.f32.partialorder %v992, 8.507059e+37
    %v994 = vand.u32 %v766, 2147483648
    %v995 = vor.u32 1.1754944e-38, %v994
    %v996 = vsel %vm993, %v995, %v991
    %v997 = vmul.f32 1.0, %v996
    %v998 = vrcp.pop %v767
    %v999 = vmul.f32 %v767, %v998
    %v1000 = vsub.f32 1.0, %v999
    %v1001 = vmul.f32 %v998, %v1000
    %v1002 = vadd.f32 %v998, %v1001
    %vm1003 = vweird.f32 %v767
    %vm1004 = vweird.f32 %v998
    %vm1005 = vmor %vm1003, %vm1004
    %v1006 = vsel %vm1005, %v998, %v1002
    %v1007 = vand.u32 2147483647, %v767
    %vm1008 = vcmp.eq.f32.partialorder %v1007, 8.507059e+37
    %v1009 = vand.u32 %v767, 2147483648
    %v1010 = vor.u32 1.1754944e-38, %v1009
    %v1011 = vsel %vm1008, %v1010, %v1006
    %v1012 = vmul.f32 1.0, %v1011
    %v1013 = vrcp.pop %v768
    %v1014 = vmul.f32 %v768, %v1013
    %v1015 = vsub.f32 1.0, %v1014
    %v1016 = vmul.f32 %v1013, %v1015
    %v1017 = vadd.f32 %v1013, %v1016
    %vm1018 = vweird.f32 %v768
    %vm1019 = vweird.f32 %v1013
    %vm1020 = vmor %vm1018, %vm1019
    %v1021 = vsel %vm1020, %v1013, %v1017
    %v1022 = vand.u32 2147483647, %v768
    %vm1023 = vcmp.eq.f32.partialorder %v1022, 8.507059e+37
    %v1024 = vand.u32 %v768, 2147483648
    %v1025 = vor.u32 1.1754944e-38, %v1024
    %v1026 = vsel %vm1023, %v1025, %v1021
    %v1027 = vmul.f32 1.0, %v1026
    %v1028 = vrcp.pop %v769
    %v1029 = vmul.f32 %v769, %v1028
    %v1030 = vsub.f32 1.0, %v1029
    %v1031 = vmul.f32 %v1028, %v1030
    %v1032 = vadd.f32 %v1028, %v1031
    %vm1033 = vweird.f32 %v769
    %vm1034 = vweird.f32 %v1028
    %vm1035 = vmor %vm1033, %vm1034
    %v1036 = vsel %vm1035, %v1028, %v1032
    %v1037 = vand.u32 2147483647, %v769
    %vm1038 = vcmp.eq.f32.partialorder %v1037, 8.507059e+37
    %v1039 = vand.u32 %v769, 2147483648
    %v1040 = vor.u32 1.1754944e-38, %v1039
    %v1041 = vsel %vm1038, %v1040, %v1036
    %v1042 = vmul.f32 1.0, %v1041
    %v1043 = vrcp.pop %v770
    %v1044 = vmul.f32 %v770, %v1043
    %v1045 = vsub.f32 1.0, %v1044
    %v1046 = vmul.f32 %v1043, %v1045
    %v1047 = vadd.f32 %v1043, %v1046
    %vm1048 = vweird.f32 %v770
    %vm1049 = vweird.f32 %v1043
    %vm1050 = vmor %vm1048, %vm1049
    %v1051 = vsel %vm1050, %v1043, %v1047
    %v1052 = vand.u32 2147483647, %v770
    %vm1053 = vcmp.eq.f32.partialorder %v1052, 8.507059e+37
    %v1054 = vand.u32 %v770, 2147483648
    %v1055 = vor.u32 1.1754944e-38, %v1054
    %v1056 = vsel %vm1053, %v1055, %v1051
    %v1057 = vmul.f32 1.0, %v1056
    %v1058 = vrcp.pop %v771
    %v1059 = vmul.f32 %v771, %v1058
    %v1060 = vsub.f32 1.0, %v1059
    %v1061 = vmul.f32 %v1058, %v1060
    %v1062 = vadd.f32 %v1058, %v1061
    %vm1063 = vweird.f32 %v771
    %vm1064 = vweird.f32 %v1058
    %vm1065 = vmor %vm1063, %vm1064
    %v1066 = vsel %vm1065, %v1058, %v1062
    %v1067 = vand.u32 2147483647, %v771
    %vm1068 = vcmp.eq.f32.partialorder %v1067, 8.507059e+37
    %v1069 = vand.u32 %v771, 2147483648
    %v1070 = vor.u32 1.1754944e-38, %v1069
    %v1071 = vsel %vm1068, %v1070, %v1066
    %v1072 = vmul.f32 1.0, %v1071
    %v1073 = vrcp.pop %v772
    %v1074 = vmul.f32 %v772, %v1073
    %v1075 = vsub.f32 1.0, %v1074
    %v1076 = vmul.f32 %v1073, %v1075
    %v1077 = vadd.f32 %v1073, %v1076
    %vm1078 = vweird.f32 %v772
    %vm1079 = vweird.f32 %v1073
    %vm1080 = vmor %vm1078, %vm1079
    %v1081 = vsel %vm1080, %v1073, %v1077
    %v1082 = vand.u32 2147483647, %v772
    %vm1083 = vcmp.eq.f32.partialorder %v1082, 8.507059e+37
    %v1084 = vand.u32 %v772, 2147483648
    %v1085 = vor.u32 1.1754944e-38, %v1084
    %v1086 = vsel %vm1083, %v1085, %v1081
    %v1087 = vmul.f32 1.0, %v1086
    %v1088 = vpack.c.bf16 %v802, %v787
    %v1089 = vpack.c.bf16 %v832, %v817
    %v1090 = vpack.c.bf16 %v862, %v847
    %v1091 = vpack.c.bf16 %v877, %v877
    %v1092 = vpack.c.bf16 %v907, %v892
    %v1093 = vpack.c.bf16 %v937, %v922
    %v1094 = vpack.c.bf16 %v967, %v952
    %v1095 = vpack.c.bf16 %v982, %v982
    %v1096 = vpack.c.bf16 %v1012, %v997
    %v1097 = vpack.c.bf16 %v1042, %v1027
    %v1098 = vpack.c.bf16 %v1072, %v1057
    %v1099 = vpack.c.bf16 %v1087, %v1087
    %1100 = vst [vmem:[%s7] sm:$0xff] %v1088
    %1101 = vst [vmem:[%s7 + $0x8] sm:$0xff] %v1089
    %1102 = vst [vmem:[%s7 + $0x10] sm:$0xff] %v1090
    %1103 = vst [vmem:[%s7 + $0x18] sm:$0xf] %v1091
    %1104 = vst [vmem:[%s7 + $0x1c] sm:$0xff] %v1092
    %1105 = vst [vmem:[%s7 + $0x24] sm:$0xff] %v1093
    %1106 = vst [vmem:[%s7 + $0x2c] sm:$0xff] %v1094
    %1107 = vst [vmem:[%s7 + $0x34] sm:$0xf] %v1095
    %1108 = vst [vmem:[%s7 + $0x38] sm:$0xff] %v1096
    %1109 = vst [vmem:[%s7 + $0x40] sm:$0xff] %v1097
    %1110 = vst [vmem:[%s7 + $0x48] sm:$0xff] %v1098
    %1111 = vst [vmem:[%s7 + $0x50] sm:$0xf] %v1099
    // Predicated region
    $region34: #{mlp_decoder_forward.1} parent=1 // pred_check
      _
    $region35: #{mlp_decoder_forward.1} parent=1 // pred_check_branch
      %1113 = sbr.rel (0) target = $region37
    $region36: #{mlp_decoder_forward.1} parent=1 // pred_region
      _
    $region37: #{mlp_decoder_forward.1} parent=1 // pred_fallthru
      _
    // Predicated region
    $region38: #{mlp_decoder_forward.1} parent=1 // pred_check
      _
    $region39: #{mlp_decoder_forward.1} parent=1 // pred_check_branch
      %1115 = sbr.rel (0) target = $region41
    $region40: #{mlp_decoder_forward.1} parent=1 // pred_region
      _
    $region41: #{mlp_decoder_forward.1} parent=1 // pred_fallthru
      _
    %1116 = vsyncpa [#allocation3], 1

</llo_original>
